<compile_context>
chip_gen: v5e
topology: v5e:2x2
jax: 0.10.0
libtpu: 0.0.40
codegen_flags: <defaults>
</compile_context>

<pallas_src>
import functools

import jax
import jax.numpy as jnp
from jax.experimental import pallas as pl
from jax.experimental.pallas import tpu as pltpu


def _round_up(x, m):
    return ((x + m - 1) // m) * m


# ----------------------------- Pallas kernels --------------------------------

def _mm_bias_kernel(a_ref, w_ref, b_ref, o_ref, *, relu):
    acc = jnp.dot(a_ref[...], w_ref[...], preferred_element_type=jnp.float32)
    acc = acc + b_ref[...]
    if relu:
        acc = jnp.maximum(acc, 0.0)
    o_ref[...] = acc


def _mm_bias_res_kernel(a_ref, w_ref, b_ref, r_ref, o_ref, *, relu):
    acc = jnp.dot(a_ref[...], w_ref[...], preferred_element_type=jnp.float32)
    acc = acc + b_ref[...] + r_ref[...]
    if relu:
        acc = jnp.maximum(acc, 0.0)
    o_ref[...] = acc


def pallas_matmul_fused(a, w, bias, residual=None, relu=False, tm=256):
    """(M,K) @ (K,N) + bias [+ residual] [-> relu], fused epilogue.

    bf16 MXU inputs, f32 accumulation.  N is padded to a multiple of 128 so all
    stores are lane-dense; M is tiled at `tm` rows (grid marked "parallel").
    """
    M, K = a.shape
    K2, N = w.shape
    assert K == K2
    Npad = _round_up(max(N, 128), 128)

    tm_eff = min(tm, _round_up(M, 16))
    Mp = _round_up(M, tm_eff)

    a_p = jnp.pad(a.astype(jnp.bfloat16), ((0, Mp - M), (0, 0)))
    w_p = jnp.pad(w.astype(jnp.bfloat16), ((0, 0), (0, Npad - N)))
    b_p = jnp.pad(bias.astype(jnp.float32), (0, Npad - N)).reshape(1, Npad)

    in_specs = [pl.BlockSpec((tm_eff, K), lambda i: (i, 0)),
                pl.BlockSpec((K, Npad), lambda i: (0, 0)),
                pl.BlockSpec((1, Npad), lambda i: (0, 0))]
    args = [a_p, w_p, b_p]

    if residual is not None:
        r_p = jnp.pad(residual.astype(jnp.float32),
                      ((0, Mp - M), (0, Npad - N)))
        in_specs.append(pl.BlockSpec((tm_eff, Npad), lambda i: (i, 0)))
        args.append(r_p)
        kernel = functools.partial(_mm_bias_res_kernel, relu=relu)
    else:
        kernel = functools.partial(_mm_bias_kernel, relu=relu)

    out = pl.pallas_call(
        kernel,
        out_shape=jax.ShapeDtypeStruct((Mp, Npad), jnp.float32),
        grid=(Mp // tm_eff,),
        in_specs=in_specs,
        out_specs=pl.BlockSpec((tm_eff, Npad), lambda i: (i, 0)),
        compiler_params=pltpu.CompilerParams(
            dimension_semantics=("parallel",)),
    )(*args)
    return out[:M, :N]


def _l1_kernel(a_ref, b_ref, o_ref, acc_ref):
    @pl.when(pl.program_id(0) == 0)
    def _():
        acc_ref[...] = jnp.zeros_like(acc_ref)

    acc_ref[...] = acc_ref[...] + jnp.sum(jnp.abs(a_ref[...] - b_ref[...]))

    @pl.when(pl.program_id(0) == pl.num_programs(0) - 1)
    def _():
        o_ref[...] = acc_ref[...]


def pallas_l1_mean(a, b):
    """mean(|a-b|) with a lane-dense (rows,128) tiled Pallas reduction."""
    n = a.size
    LANES = 128
    rows_needed = (n + LANES - 1) // LANES
    tr = min(256, _round_up(rows_needed, 8))
    rows = _round_up(rows_needed, tr)
    total = rows * LANES

    af = jnp.pad(a.reshape(-1).astype(jnp.float32), (0, total - n)).reshape(rows, LANES)
    bf = jnp.pad(b.reshape(-1).astype(jnp.float32), (0, total - n)).reshape(rows, LANES)

    s = pl.pallas_call(
        _l1_kernel,
        out_shape=jax.ShapeDtypeStruct((1, 1), jnp.float32),
        grid=(rows // tr,),
        in_specs=[pl.BlockSpec((tr, LANES), lambda i: (i, 0)),
                  pl.BlockSpec((tr, LANES), lambda i: (i, 0))],
        out_specs=pl.BlockSpec((1, 1), lambda i: (0, 0)),
        scratch_shapes=[pltpu.VMEM((1, 1), jnp.float32)],
        compiler_params=pltpu.CompilerParams(
            dimension_semantics=("arbitrary",)),
    )(af, bf)
    return s[0, 0] / n


# ----------------------------- conv via im2col --------------------------------

def conv3x3(x, w, b, relu=False, residual=None):
    """x: [B,H,W,Cin] NHWC, w: [3,3,Cin,Cout], b: [Cout].  stride 1, pad 1.

    bias / residual-add / relu are fused into the Pallas matmul epilogue.
    TODO(synk): replace JAX-side im2col with halo-block loading inside the
    kernel when scaling beyond small spatial sizes.
    """
    B, H, W, Cin = x.shape
    Cout = w.shape[-1]
    xp = jnp.pad(x, ((0, 0), (1, 1), (1, 1), (0, 0)))
    cols = [xp[:, dy:dy + H, dx:dx + W, :] for dy in range(3) for dx in range(3)]
    patches = jnp.concatenate(cols, axis=-1).reshape(B * H * W, 9 * Cin)
    wm = w.reshape(9 * Cin, Cout)
    res2 = residual.reshape(B * H * W, Cout) if residual is not None else None
    y = pallas_matmul_fused(patches, wm, b, residual=res2, relu=relu)
    return y.reshape(B, H, W, Cout)


# ----------------------------- sub-networks -----------------------------------

def pencoder_forward(p, x):
    # TODO(synk): full ResUNet(depth=3) down/up-sampling path simplified to a
    # residual conv stack with the correct 32-channel output.
    h = conv3x3(x, p['w1'], p['b1'], relu=True)
    h = conv3x3(h, p['w2'], p['b2'], relu=True)
    return conv3x3(h, p['w3'], p['b3'], relu=True, residual=h)   # relu(h + conv(h))


def resnet_forward(p, x, final_residual=None):
    h = conv3x3(x, p['w_in'], p['b_in'], relu=True)
    r = conv3x3(h, p['w_r1'], p['b_r1'], relu=True)
    h = conv3x3(r, p['w_r2'], p['b_r2'], relu=True, residual=h)  # relu(h + conv(r))
    return conv3x3(h, p['w_out'], p['b_out'], relu=False, residual=final_residual)


# ----------------------------- geometry utils ----------------------------------

def pixel_grid(H, W):
    v, u = jnp.meshgrid(jnp.arange(H, dtype=jnp.float32),
                        jnp.arange(W, dtype=jnp.float32), indexing='ij')
    return u.reshape(-1), v.reshape(-1)


def project_points(depth, T, u, v):
    """Unproject pixels with depth and apply 4x4 transform T.

    depth: (R, N); T: (R, 4, 4); u, v: (N,).  Plain VPU elementwise math
    (16 FMAs/pixel) -- no Pallas launch needed for a 4x4 transform.
    """
    X = u[None, :] * depth
    Y = v[None, :] * depth
    Z = depth

    def apply_row(i):
        return (T[:, i, 0:1] * X + T[:, i, 1:2] * Y +
                T[:, i, 2:3] * Z + T[:, i, 3:4])

    qx, qy, qz = apply_row(0), apply_row(1), apply_row(2)
    zc = jnp.where(jnp.abs(qz) < 1e-6, 1e-6, qz)
    return qx / zc, qy / zc, qz


def soft_zbuffer_splat_batched(x, y, z, feats, batch_idx, B, H, W, gamma=5.0):
    # TODO(synk): hard z-buffer rasterization (scatter) stays in JAX
    # segment_sum; exp(-gamma*z) soft weights can underflow for far points.
    Np = H * W
    xi = jnp.round(x).astype(jnp.int32)
    yi = jnp.round(y).astype(jnp.int32)
    valid = (xi >= 0) & (xi < W) & (yi >= 0) & (yi < H) & (z > 1e-4)
    pix = jnp.clip(yi, 0, H - 1) * W + jnp.clip(xi, 0, W - 1)
    seg = (batch_idx[:, None] * Np + pix).reshape(-1)
    w = jnp.where(valid, jnp.exp(-gamma * z), 0.0)
    num = jax.ops.segment_sum((feats * w[..., None]).reshape(-1, feats.shape[-1]),
                              seg, num_segments=B * Np)
    den = jax.ops.segment_sum(w.reshape(-1), seg, num_segments=B * Np)
    znum = jax.ops.segment_sum((z * w).reshape(-1), seg, num_segments=B * Np)
    return num, den, znum


def pts_forward_justpts(cfs_1, cfs_2, depth_1, depth_2, K, Kinv,
                        RTinv1, RTinv2, outRT, H, W):
    """Project features of both source views into the target view (soft z-buffer).

    Both views and all batches are folded into one leading dimension; a single
    segment_sum performs the splat for all of them.
    """
    B, _, _, C = cfs_1.shape
    N = H * W
    u, v = pixel_grid(H, W)

    T1 = jnp.einsum('bij,bjk,bkl,blm->bim', K, outRT, RTinv1, Kinv)
    T2 = jnp.einsum('bij,bjk,bkl,blm->bim', K, outRT, RTinv2, Kinv)
    T = jnp.concatenate([T1, T2], axis=0)                                   # (2B,4,4)
    depth = jnp.concatenate([depth_1.reshape(B, N), depth_2.reshape(B, N)], 0)
    feats = jnp.concatenate([cfs_1.reshape(B, N, C), cfs_2.reshape(B, N, C)], 0)
    batch_idx = jnp.concatenate([jnp.arange(B), jnp.arange(B)], axis=0)

    x, y, z = project_points(depth, T, u, v)
    num, den, znum = soft_zbuffer_splat_batched(x, y, z, feats, batch_idx, B, H, W)

    comp = num / (den[:, None] + 1e-8)
    dep = jnp.where(den > 1e-6, znum / (den + 1e-8), 1.0)
    gen_img = comp[:, :3].reshape(B, H, W, 3)
    gen_fs = comp[:, 3:].reshape(B, H, W, C - 3)
    gen_depth = dep.reshape(B, H, W)
    return gen_img, gen_fs, gen_depth


def bilinear_sample(img, x, y):
    # TODO(synk): bilinear gather stays in plain JAX (data-dependent gather).
    H, W, C = img.shape
    x0f, y0f = jnp.floor(x), jnp.floor(y)
    wx, wy = x - x0f, y - y0f
    x0, y0 = x0f.astype(jnp.int32), y0f.astype(jnp.int32)
    x1, y1 = x0 + 1, y0 + 1
    flat = img.reshape(H * W, C)

    def g(xi, yi):
        xi = jnp.clip(xi, 0, W - 1)
        yi = jnp.clip(yi, 0, H - 1)
        return flat[yi * W + xi]

    top = g(x0, y0) * (1 - wx)[:, None] + g(x1, y0) * wx[:, None]
    bot = g(x0, y1) * (1 - wx)[:, None] + g(x1, y1) * wx[:, None]
    out = top * (1 - wy)[:, None] + bot * wy[:, None]
    valid = (x >= 0) & (x <= W - 1) & (y >= 0) & (y <= H - 1)
    return out, valid


def inverse_warp_batched(imgs_nhwc, depth_flat, pose, K):
    """imgs: [R,H,W,3]; depth_flat: [R,H*W]; pose, K: [R,4,4]."""
    R, H, W, C = imgs_nhwc.shape
    u, v = pixel_grid(H, W)
    Kinv = jnp.linalg.inv(K)
    M = jnp.einsum('bij,bjk,bkl->bil', K, pose, Kinv)
    x, y, z = project_points(depth_flat, M, u, v)
    samp, valid = jax.vmap(bilinear_sample)(imgs_nhwc, x, y)
    m = (valid & (z > 1e-4)).astype(jnp.float32)
    out = (samp * m[..., None]).reshape(R, H, W, C)
    return out, m.reshape(R, H, W)


# ----------------------------- parameters --------------------------------------

def init_params(key):
    ks = jax.random.split(key, 16)

    def w(i, cin, cout, scale=0.05):
        return jax.random.normal(ks[i], (3, 3, cin, cout), jnp.float32) * scale

    def b(cout):
        return jnp.zeros((cout,), jnp.float32)

    pencoder = {'w1': w(0, 3, 16), 'b1': b(16),
                'w2': w(1, 16, 32), 'b2': b(32),
                'w3': w(2, 32, 32), 'b3': b(32)}
    refine = {'w_in': w(3, 32, 64), 'b_in': b(64),
              'w_r1': w(4, 64, 64), 'b_r1': b(64),
              'w_r2': w(5, 64, 64), 'b_r2': b(64),
              'w_out': w(6, 64, 3), 'b_out': b(3)}
    resnet = {'w_in': w(7, 9, 64), 'b_in': b(64),
              'w_r1': w(8, 64, 64), 'b_r1': b(64),
              'w_r2': w(9, 64, 64), 'b_r2': b(64),
              'w_out': w(10, 64, 3), 'b_out': b(3)}
    return pencoder, refine, resnet


# ----------------------------- the model ---------------------------------------

class ZbufferModelPtsPallas:
    def __init__(self, key, H=16, W=16):
        self.H, self.W = H, W
        self.p_enc, self.p_refine, self.p_res = init_params(key)

    def forward(self, batch, isval=False):
        to_nhwc = lambda t: jnp.transpose(t, (0, 2, 3, 1))
        to_nchw = lambda t: jnp.transpose(t, (0, 3, 1, 2))

        input_img_1 = batch['images'][1]
        input_img_2 = batch['images'][2]
        output_img = batch['images'][0]
        depth_img_1 = batch['depths'][1][:, 0]
        depth_img_2 = batch['depths'][2][:, 0]

        K = batch['cameras'][1]['K']
        K_inv = batch['cameras'][1]['Kinv']
        input_RTinv_1 = batch['cameras'][1]['Pinv']
        input_RTinv_2 = batch['cameras'][2]['Pinv']
        output_RT = batch['cameras'][0]['P']
        pose_t1 = batch['cameras'][1]['proj']
        pose_t2 = batch['cameras'][2]['proj']

        img1 = to_nhwc(input_img_1)
        img2 = to_nhwc(input_img_2)
        out_img = to_nhwc(output_img)
        B = img1.shape[0]

        # encoder (no_grad in the reference; inference only here).
        # Both source views in one call -> M = 2*B*H*W rows for the matmuls.
        pfs = pencoder_forward(self.p_enc, jnp.concatenate([img1, img2], axis=0))
        pfs_1, pfs_2 = pfs[:B], pfs[B:]
        cfs_1 = jnp.concatenate([img1, pfs_1], axis=-1)   # [B,H,W,35]
        cfs_2 = jnp.concatenate([img2, pfs_2], axis=-1)

        gen_img, gen_fs, gen_depth = pts_forward_justpts(
            cfs_1, cfs_2, depth_img_1, depth_img_2, K, K_inv,
            input_RTinv_1, input_RTinv_2, output_RT, self.H, self.W)

        # refine_img = gen_img + refine_resnet(gen_fs); residual add fused into
        # the final conv's matmul epilogue.
        refine_img = resnet_forward(self.p_refine, gen_fs, final_residual=gen_img)

        # Both inverse warps in one batched call.
        depth_flat = gen_depth.reshape(B, -1)
        warped, _ = inverse_warp_batched(
            jnp.concatenate([img1, img2], axis=0),
            jnp.concatenate([depth_flat, depth_flat], axis=0),
            jnp.concatenate([pose_t1, pose_t2], axis=0),
            jnp.concatenate([K, K], axis=0))
        warped_1, warped_2 = warped[:B], warped[B:]

        # hf_img = refine_img + resnet(cat); residual add fused as well.
        hf_img = resnet_forward(
            self.p_res,
            jnp.concatenate([refine_img, warped_1, warped_2], axis=-1),
            final_residual=refine_img)

        # TODO(synk): SynthesisLoss perceptual/VGG terms omitted; L1 term in Pallas.
        loss = pallas_l1_mean(hf_img, out_img)

        return loss, {'InputImg_1': input_img_1,
                      'InputImg_2': input_img_2,
                      'OutputImg': output_img,
                      'PredImg': to_nchw(gen_img),
                      'Depth_tar': gen_depth[:, None],
                      'RefineImg': to_nchw(refine_img),
                      'HFRefineImg': to_nchw(hf_img)}


# ----------------------------- main ---------------------------------------------

if __name__ == "__main__":
    key = jax.random.PRNGKey(0)
    B, H, W = 2, 16, 16
    k_img, k_dep = jax.random.split(key, 2)

    imgs = [jax.random.uniform(jax.random.fold_in(k_img, i), (B, 3, H, W), jnp.float32)
            for i in range(3)]
    deps = [1.0 + jax.random.uniform(jax.random.fold_in(k_dep, i), (B, 1, H, W), jnp.float32)
            for i in range(3)]

    f, cx, cy = float(W), W / 2.0, H / 2.0
    Kmat = jnp.array([[f, 0, cx, 0], [0, f, cy, 0], [0, 0, 1, 0], [0, 0, 0, 1]], jnp.float32)
    Kb = jnp.tile(Kmat[None], (B, 1, 1))
    Kinvb = jnp.tile(jnp.linalg.inv(Kmat)[None], (B, 1, 1))

    def extrinsic(angle, tx):
        c, s = jnp.cos(angle), jnp.sin(angle)
        return jnp.array([[c, -s, 0.0, tx],
                          [s, c, 0.0, 0.0],
                          [0.0, 0.0, 1.0, 0.05],
                          [0.0, 0.0, 0.0, 1.0]], jnp.float32)

    Ps = [extrinsic(a, t) for a, t in [(0.0, 0.0), (0.05, 0.1), (-0.05, -0.1)]]
    cameras = []
    for i, P in enumerate(Ps):
        Pinv = jnp.linalg.inv(P)
        proj = P @ jnp.linalg.inv(Ps[0])   # target(view0) cam -> source(view i) cam
        cameras.append({'K': Kb, 'Kinv': Kinvb,
                        'P': jnp.tile(P[None], (B, 1, 1)),
                        'Pinv': jnp.tile(Pinv[None], (B, 1, 1)),
                        'warp': [jnp.tile(P[None], (B, 1, 1))],
                        'proj': jnp.tile(proj[None], (B, 1, 1))})

    batch = {'images': imgs, 'depths': deps, 'cameras': cameras}

    model = ZbufferModelPtsPallas(jax.random.PRNGKey(42), H=H, W=W)
    loss, outputs = model.forward(batch, isval=True)

    jax.block_until_ready(loss)
    for leaf in jax.tree_util.tree_leaves(outputs):
        jax.block_until_ready(leaf)
    print("KERNEL_OK")
</pallas_src>

<mosaic_0001>
module attributes {stable_mosaic.version = 11 : i64} {
  func.func @_mm_bias_kernel(%arg0: i32, %arg1: memref<256x27xbf16, #tpu.memory_space<vmem>>, %arg2: memref<27x128xbf16, #tpu.memory_space<vmem>>, %arg3: memref<1x128xf32, #tpu.memory_space<vmem>>, %arg4: memref<256x128xf32, #tpu.memory_space<vmem>>) attributes {dimension_semantics = [#tpu.dimension_semantics<parallel>], iteration_bounds = array<i64: 4>, scalar_prefetch = 0 : i64, scratch_operands = 0 : i64, tpu.core_type = #tpu.core_type<tc>, window_params = [{transform_indices = @transform_0, window_bounds = array<i64: 256, 27>}, {pipeline_mode = #tpu.pipeline_mode<synchronous>, transform_indices = @transform_1, window_bounds = array<i64: 27, 128>}, {pipeline_mode = #tpu.pipeline_mode<synchronous>, transform_indices = @transform_2, window_bounds = array<i64: 1, 128>}, {transform_indices = @transform_3, window_bounds = array<i64: 256, 128>}]} {
    %c0 = arith.constant 0 : index
    %c0_0 = arith.constant 0 : index
    %0 = vector.load %arg1[%c0, %c0_0] : memref<256x27xbf16, #tpu.memory_space<vmem>>, vector<256x27xbf16>
    %c0_1 = arith.constant 0 : index
    %c0_2 = arith.constant 0 : index
    %1 = vector.load %arg2[%c0_1, %c0_2] : memref<27x128xbf16, #tpu.memory_space<vmem>>, vector<27x128xbf16>
    %cst = arith.constant dense<0.000000e+00> : vector<256x128xf32>
    %2 = tpu.matmul %0, %1, %cst {dimension_numbers = #tpu.dot_dimension_numbers<[1], [0], [0], [1], [0, 0, 1, 1], [], []>} : vector<256x27xbf16>, vector<27x128xbf16>, vector<256x128xf32> -> vector<256x128xf32>
    %c0_3 = arith.constant 0 : index
    %c0_4 = arith.constant 0 : index
    %3 = vector.load %arg3[%c0_3, %c0_4] : memref<1x128xf32, #tpu.memory_space<vmem>>, vector<1x128xf32>
    %4 = vector.broadcast %3 : vector<1x128xf32> to vector<256x128xf32>
    %5 = arith.addf %2, %4 : vector<256x128xf32>
    %cst_5 = arith.constant 0.000000e+00 : f32
    %6 = vector.broadcast %cst_5 : f32 to vector<256x128xf32>
    %7 = arith.maximumf %5, %6 : vector<256x128xf32>
    %c0_6 = arith.constant 0 : index
    %c0_7 = arith.constant 0 : index
    %8 = vector.load %arg4[%c0_6, %c0_7] : memref<256x128xf32, #tpu.memory_space<vmem>>, vector<256x128xf32>
    tpu.vector_store %arg4[%c0_6, %c0_7], %7 {strides = array<i32>} : memref<256x128xf32, #tpu.memory_space<vmem>>, vector<256x128xf32>,
    return
  }
  func.func @transform_0(%arg0: i32) -> (i32, i32) {
    %c0_i32 = arith.constant 0 : i32
    %c0_i32_0 = arith.constant 0 : i32
    return %arg0, %c0_i32 : i32, i32
  }
  func.func @transform_1(%arg0: i32) -> (i32, i32) {
    %c0_i32 = arith.constant 0 : i32
    %c0_i32_0 = arith.constant 0 : i32
    %c0_i32_1 = arith.constant 0 : i32
    return %c0_i32, %c0_i32_0 : i32, i32
  }
  func.func @transform_2(%arg0: i32) -> (i32, i32) {
    %c0_i32 = arith.constant 0 : i32
    %c0_i32_0 = arith.constant 0 : i32
    %c0_i32_1 = arith.constant 0 : i32
    return %c0_i32, %c0_i32_0 : i32, i32
  }
  func.func @transform_3(%arg0: i32) -> (i32, i32) {
    %c0_i32 = arith.constant 0 : i32
    %c0_i32_0 = arith.constant 0 : i32
    return %arg0, %c0_i32 : i32, i32
  }
}

</mosaic_0001>

<llo_original>
// kernel: tpu_custom_call.1
$region0: #{tpu_custom_call.1}
  #allocation0 [shape = 'u32[]', space=smem, size = 0x4, offset = 0x4, fixed_abs, tag = 'smem constant byte address 0x4 - core index']
  #allocation1 [shape = 'u32[72,128]{1,0:T(1,128)}', space=vmem, size = 0x9000, scoped, tag = 'internal scratch']
  %s0 = inlined_call_operand.vmem [shape: bf16[1024,27], index: 0, kind: input, shape index: {}]
  %s1 = inlined_call_operand.vmem [shape: bf16[27,128], index: 1, kind: input, shape index: {}]
  %s2 = inlined_call_operand.vmem [shape: f32[1,128], index: 2, kind: input, shape index: {}]
  %s3 = inlined_call_operand.hbm [shape: f32[1024,128], index: 3, kind: output, shape index: {}]
  %s4 = sld [smem:[#allocation0]]
  $region45: #{tpu_custom_call.1} parent=0
    _
  %s6 = ssub.s32 1, %s4
  %s7 = scalar_select 0, %s6, %s4
  $region1: #{tpu_custom_call.1} parent=0
    #allocation2 [shape = 'u8[262144]{0}', space=vmem, size = 0x40000, scoped, tag = 'output window, operand 0']
    #allocation3 [shape = 's32[2]{0}', space=sflag, size = 0x8, scoped, tag = 'scoped memory for tpu_custom_call.1']
    %8 = vsyncpa [#allocation3], 0
    %s9 = scalar_lea.sflag [#allocation3], 1
    %10 = vsyncpa %s9, 0
    loop: start=0, step=1, limit=6
    $region2: #{tpu_custom_call.1} parent=1 // loop_pre_header
      _
    $region3: #{tpu_custom_call.1} parent=1 // loop_header
      %s12 = sphi 0, %s16
      %p13 = scmp.ge.s32.totalorder %s12, 6
      %s22 = sphi 0, %s24
      %s25 = sphi 0, %s22
      %s26 = sphi 0, %s25
      %s42 = sphi 0, %s26
      %s46 = sphi 0, %s46
      %s48 = sphi 0, %s46
      %s49 = sphi 0, %s48
      %s63 = sphi 0, %s49
      %s67 = sphi 0, %s67
      %s69 = sphi 0, %s67
      %s70 = sphi 0, %s69
      %s84 = sphi 0, %s70
      %s90 = sphi 0, %s92
      %s93 = sphi 0, %s90
      %s94 = sphi 0, %s93
      %s110 = sphi 0, %s94
    $region4: #{tpu_custom_call.1} parent=1 // loop_header_branch
      %15 = sbr.rel (%p13) target = $region8
    $region5: #{tpu_custom_call.1} parent=1 // loop_body
      %s17 = ssub.s32 %s12, 1
      %s18 = ssub.s32 %s12, 2
      %s19 = sadd.s32 %s12, 1
      %s20 = ssub.s32 %s12, %s19
      %p21 = scmp.eq.s32.totalorder %s20, 0
      %s23 = sadd.s32 %s22, 1
      %s24 = scalar_select %p21, %s22, %s23
      %p27 = pneg %p21
      %p28 = scmp.eq.s32.totalorder %s12, 3
      %p29 = por %p27, %p28
      %p30 = scmp.ne.s32.totalorder %s22, %s25
      %p31 = scmp.eq.s32.totalorder %s12, 0
      %p32 = por %p30, %p31
      %p33 = scmp.ne.s32.totalorder %s22, %s25
      %p34 = scmp.eq.s32.totalorder %s17, 3
      %p35 = por %p33, %p34
      %p36 = scmp.ne.s32.totalorder %s25, %s26
      %p37 = scmp.eq.s32.totalorder %s17, 0
      %p38 = por %p36, %p37
      %p39 = scmp.ne.s32.totalorder %s25, %s26
      %p40 = scmp.eq.s32.totalorder %s18, 3
      %p41 = por %p39, %p40
      %p43 = scmp.ne.s32.totalorder %s26, %s42
      %p44 = scmp.eq.s32.totalorder %s18, 0
      %p45 = por %p43, %p44
      %s47 = sadd.s32 %s46, 1
      %p50 = scmp.eq.s32.totalorder %s12, 3
      %p51 = scmp.ne.s32.totalorder %s46, %s48
      %p52 = scmp.eq.s32.totalorder %s12, 0
      %p53 = por %p51, %p52
      %p54 = scmp.ne.s32.totalorder %s46, %s48
      %p55 = scmp.eq.s32.totalorder %s17, 3
      %p56 = por %p54, %p55
      %p57 = scmp.ne.s32.totalorder %s48, %s49
      %p58 = scmp.eq.s32.totalorder %s17, 0
      %p59 = por %p57, %p58
      %p60 = scmp.ne.s32.totalorder %s48, %s49
      %p61 = scmp.eq.s32.totalorder %s18, 3
      %p62 = por %p60, %p61
      %p64 = scmp.ne.s32.totalorder %s49, %s63
      %p65 = scmp.eq.s32.totalorder %s18, 0
      %p66 = por %p64, %p65
      %s68 = sadd.s32 %s67, 1
      %p71 = scmp.eq.s32.totalorder %s12, 3
      %p72 = scmp.ne.s32.totalorder %s67, %s69
      %p73 = scmp.eq.s32.totalorder %s12, 0
      %p74 = por %p72, %p73
      %p75 = scmp.ne.s32.totalorder %s67, %s69
      %p76 = scmp.eq.s32.totalorder %s17, 3
      %p77 = por %p75, %p76
      %p78 = scmp.ne.s32.totalorder %s69, %s70
      %p79 = scmp.eq.s32.totalorder %s17, 0
      %p80 = por %p78, %p79
      %p81 = scmp.ne.s32.totalorder %s69, %s70
      %p82 = scmp.eq.s32.totalorder %s18, 3
      %p83 = por %p81, %p82
      %p85 = scmp.ne.s32.totalorder %s70, %s84
      %p86 = scmp.eq.s32.totalorder %s18, 0
      %p87 = por %p85, %p86
      %s88 = ssub.s32 %s12, %s19
      %p89 = scmp.eq.s32.totalorder %s88, 0
      %s91 = sadd.s32 %s90, 1
      %s92 = scalar_select %p89, %s90, %s91
      %p95 = pneg %p89
      %p96 = scmp.eq.s32.totalorder %s12, 3
      %p97 = por %p95, %p96
      %p98 = scmp.ne.s32.totalorder %s90, %s93
      %p99 = scmp.eq.s32.totalorder %s12, 0
      %p100 = por %p98, %p99
      %p101 = scmp.ne.s32.totalorder %s90, %s93
      %p102 = scmp.eq.s32.totalorder %s17, 3
      %p103 = por %p101, %p102
      %p104 = scmp.ne.s32.totalorder %s93, %s94
      %p105 = scmp.eq.s32.totalorder %s17, 0
      %p106 = por %p104, %p105
      %p107 = scmp.ne.s32.totalorder %s93, %s94
      %p108 = scmp.eq.s32.totalorder %s18, 3
      %p109 = por %p107, %p108
      %p111 = scmp.ne.s32.totalorder %s94, %s110
      %p112 = scmp.eq.s32.totalorder %s18, 0
      %p113 = por %p111, %p112
      %p114 = scmp.le.s32.totalorder 1, %s12
      %p115 = scmp.lt.s32.totalorder %s12, 5
      %p116 = pnand %p114, %p115
      %p117 = pneg %p116
      // Predicated region
      $region9: #{tpu_custom_call.1} parent=5 // pred_check
        _
      $region10: #{tpu_custom_call.1} parent=5 // pred_check_branch
        %119 = sbr.rel (%p116) target = $region12
      $region11: #{tpu_custom_call.1} parent=5 // pred_region
        %s120 = ssub.s32 %s12, 1
        // Predicated region
        $region13: #{tpu_custom_call.1} parent=11 // pred_check
          %p121 = pneg %p59
        $region14: #{tpu_custom_call.1} parent=11 // pred_check_branch
          %123 = sbr.rel (%p121) target = $region16
        $region15: #{tpu_custom_call.1} parent=11 // pred_region
          _
        $region16: #{tpu_custom_call.1} parent=11 // pred_fallthru
          _
        // Predicated region
        $region17: #{tpu_custom_call.1} parent=11 // pred_check
          %p124 = pneg %p80
        $region18: #{tpu_custom_call.1} parent=11 // pred_check_branch
          %126 = sbr.rel (%p124) target = $region20
        $region19: #{tpu_custom_call.1} parent=11 // pred_region
          _
        $region20: #{tpu_custom_call.1} parent=11 // pred_fallthru
          _
      $region12: #{tpu_custom_call.1} parent=5 // pred_fallthru
        _
      %p127 = scmp.lt.s32.totalorder %s12, 4
      // Predicated region
      $region21: #{tpu_custom_call.1} parent=5 // pred_check
        %p128 = pneg %p127
      $region22: #{tpu_custom_call.1} parent=5 // pred_check_branch
        %130 = sbr.rel (%p128) target = $region24
      $region23: #{tpu_custom_call.1} parent=5 // pred_region
        // Predicated region
        $region25: #{tpu_custom_call.1} parent=23 // pred_check
          %p131 = pneg %p32
        $region26: #{tpu_custom_call.1} parent=23 // pred_check_branch
          %133 = sbr.rel (%p131) target = $region28
        $region27: #{tpu_custom_call.1} parent=23 // pred_region
          %s134 = smul.u32 32, %s12
          %p135 = scmp.lt.s32.totalorder %s134, 127
          %s136 = scalar_select %p135, %s134, 127
          %s137 = smul.addr %s136, 4
          %s138 = scalar_lea.vmem %s0, %s137
          %s139 = smul.u32 32, %s12
        $region28: #{tpu_custom_call.1} parent=23 // pred_fallthru
          _
      $region24: #{tpu_custom_call.1} parent=5 // pred_fallthru
        _
      %p140 = scmp.le.s32.totalorder 1, %s12
      %p141 = scmp.lt.s32.totalorder %s12, 5
      %p142 = pnand %p140, %p141
      %p143 = pneg %p142
      // Predicated region
      $region29: #{tpu_custom_call.1} parent=5 // pred_check
        _
      $region30: #{tpu_custom_call.1} parent=5 // pred_check_branch
        %145 = sbr.rel (%p142) target = $region32
      $region31: #{tpu_custom_call.1} parent=5 // pred_region
        %s146 = ssub.s32 %s12, 1
        %s147 = smul.u32 32, %s17
        %p148 = scmp.lt.s32.totalorder %s147, 127
        %s149 = scalar_select %p148, %s147, 127
        %s150 = smul.addr %s149, 4
        %s151 = scalar_lea.vmem %s0, %s150
        %p152 = pneg %p38
        %p153 = pneg %p35
        %p154 = pneg %p59
        %p155 = pneg %p56
        %p156 = pneg %p80
        %p157 = pneg %p77
        %p158 = pneg %p106
        %p159 = pneg %p103
        %s160 = sand.u32 %s93, 1
        %s161 = scalar_lea.sflag [#allocation3], %s160
        %s162 = sand.u32 %s93, 1
        %s163 = smul.addr %s162, 256
        %s164 = scalar_lea.vmem [#allocation2], %s163
        %s165 = smul.u32 32, %s17
        %p166 = scmp.lt.s32.totalorder %s165, 127
        %s167 = scalar_select %p166, %s165, 127
        %s168 = smul.addr %s167, 4
        %s169 = scalar_lea.vmem %s0, %s168
        %s170 = smul.u32 32, %s17
        %s171 = smul.u32 32, %s17
        %v173 = vld [vmem:[%s169] sm:$0xf]
        %v174 = vld [vmem:[%s169 + $0x4] sm:$0xf]
        %v175 = vld [vmem:[%s169 + $0x8] sm:$0xf]
        %v176 = vld [vmem:[%s169 + $0xc] sm:$0xf]
        %v177 = vld [vmem:[%s169 + $0x10] sm:$0xf]
        %v178 = vld [vmem:[%s169 + $0x14] sm:$0xf]
        %v179 = vld [vmem:[%s169 + $0x18] sm:$0xf]
        %v180 = vld [vmem:[%s169 + $0x1c] sm:$0xf]
        %v181 = vld [vmem:[%s169 + $0x20] sm:$0xf]
        %v182 = vld [vmem:[%s169 + $0x24] sm:$0xf]
        %v183 = vld [vmem:[%s169 + $0x28] sm:$0xf]
        %v184 = vld [vmem:[%s169 + $0x2c] sm:$0xf]
        %v185 = vld [vmem:[%s169 + $0x30] sm:$0xf]
        %v186 = vld [vmem:[%s169 + $0x34] sm:$0xf]
        %v187 = vld [vmem:[%s169 + $0x38] sm:$0xf]
        %v188 = vld [vmem:[%s169 + $0x3c] sm:$0xf]
        %v189 = vld [vmem:[%s169 + $0x40] sm:$0xf]
        %v190 = vld [vmem:[%s169 + $0x44] sm:$0xf]
        %v191 = vld [vmem:[%s169 + $0x48] sm:$0xf]
        %v192 = vld [vmem:[%s169 + $0x4c] sm:$0xf]
        %v193 = vld [vmem:[%s169 + $0x50] sm:$0xf]
        %v194 = vld [vmem:[%s169 + $0x54] sm:$0xf]
        %v195 = vld [vmem:[%s169 + $0x58] sm:$0xf]
        %v196 = vld [vmem:[%s169 + $0x5c] sm:$0xf]
        %v197 = vld [vmem:[%s169 + $0x60] sm:$0xf]
        %v198 = vld [vmem:[%s169 + $0x64] sm:$0xf]
        %v199 = vld [vmem:[%s169 + $0x68] sm:$0xf]
        %v200 = vld [vmem:[%s169 + $0x6c] sm:$0xf]
        %v201 = vld [vmem:[%s169 + $0x70] sm:$0xf]
        %v202 = vld [vmem:[%s169 + $0x74] sm:$0xf]
        %v203 = vld [vmem:[%s169 + $0x78] sm:$0xf]
        %v204 = vld [vmem:[%s169 + $0x7c] sm:$0xf]
        %v205 = vld [vmem:[%s1] sm:$0xf]
        %v206 = vld [vmem:[%s1 + $0x4] sm:$0xf]
        %v207 = vld [vmem:[%s1 + $0x8] sm:$0xf]
        %v208 = vld [vmem:[%s1 + $0xc] sm:$0x3]
        %v209 = vld [vmem:[%s2] sm:$0x1]
        %v211 = vperm.slane %v209, 0
        %v245 = vunpack.c.l.b16 %v173
        %v246 = vunpack.c.l.b16 %v174
        %v247 = vunpack.c.l.b16 %v175
        %v248 = vunpack.c.l.b16 %v176
        %v249 = vunpack.c.l.b16 %v177
        %v250 = vunpack.c.l.b16 %v178
        %v251 = vunpack.c.l.b16 %v179
        %v252 = vunpack.c.l.b16 %v180
        %v253 = vunpack.c.l.b16 %v181
        %v254 = vunpack.c.l.b16 %v182
        %v255 = vunpack.c.l.b16 %v183
        %v256 = vunpack.c.l.b16 %v184
        %v257 = vunpack.c.l.b16 %v185
        %v258 = vunpack.c.l.b16 %v186
        %v259 = vunpack.c.l.b16 %v187
        %v260 = vunpack.c.l.b16 %v188
        %v261 = vunpack.c.l.b16 %v189
        %v262 = vunpack.c.l.b16 %v190
        %v263 = vunpack.c.l.b16 %v191
        %v264 = vunpack.c.l.b16 %v192
        %v265 = vunpack.c.l.b16 %v193
        %v266 = vunpack.c.l.b16 %v194
        %v267 = vunpack.c.l.b16 %v195
        %v268 = vunpack.c.l.b16 %v196
        %v269 = vunpack.c.l.b16 %v197
        %v270 = vunpack.c.l.b16 %v198
        %v271 = vunpack.c.l.b16 %v199
        %v272 = vunpack.c.l.b16 %v200
        %v273 = vunpack.c.l.b16 %v201
        %v274 = vunpack.c.l.b16 %v202
        %v275 = vunpack.c.l.b16 %v203
        %v276 = vunpack.c.l.b16 %v204
        %v277 = vpack.c.b16 %v246, %v245
        %v278 = vpack.c.b16 %v248, %v247
        %v279 = vpack.c.b16 %v250, %v249
        %v280 = vpack.c.b16 %v252, %v251
        %v281 = vpack.c.b16 %v254, %v253
        %v282 = vpack.c.b16 %v256, %v255
        %v283 = vpack.c.b16 %v258, %v257
        %v284 = vpack.c.b16 %v260, %v259
        %v285 = vpack.c.b16 %v262, %v261
        %v286 = vpack.c.b16 %v264, %v263
        %v287 = vpack.c.b16 %v266, %v265
        %v288 = vpack.c.b16 %v268, %v267
        %v289 = vpack.c.b16 %v270, %v269
        %v290 = vpack.c.b16 %v272, %v271
        %v291 = vpack.c.b16 %v274, %v273
        %v292 = vpack.c.b16 %v276, %v275
        %v297 = vunpack.c.l.b16 %v205
        %v298 = vunpack.c.l.b16 %v206
        %v299 = vunpack.c.l.b16 %v207
        %v300 = vunpack.c.l.b16 %v208
        %v301 = vpack.c.b16 %v298, %v297
        %v302 = vpack.c.b16 %v300, %v299
        %vm304 = vcmask 220160
        %v306 = vsel %vm304, %v277, 0
        %v309 = vsel %vm304, %v278, 0
        %v312 = vsel %vm304, %v279, 0
        %v315 = vsel %vm304, %v280, 0
        %v318 = vsel %vm304, %v281, 0
        %v321 = vsel %vm304, %v282, 0
        %v324 = vsel %vm304, %v283, 0
        %v327 = vsel %vm304, %v284, 0
        %v330 = vsel %vm304, %v285, 0
        %v333 = vsel %vm304, %v286, 0
        %v336 = vsel %vm304, %v287, 0
        %v339 = vsel %vm304, %v288, 0
        %v342 = vsel %vm304, %v289, 0
        %v345 = vsel %vm304, %v290, 0
        %v348 = vsel %vm304, %v291, 0
        %v351 = vsel %vm304, %v292, 0
        %vm353 = vcmask 1044480
        %vm354 = vcmask 1045504
        %v355 = vsel %vm353, 4294967295, 65535
        %v356 = vsel %vm354, %v355, 0
        %v358 = vand.u32 %v302, %v356
        %360 = vmatpush.bf16.msra.mxu0 0
        %361 = vmatpush.bf16.msra.mxu0 0
        %362 = vmatpush.bf16.msra.mxu0 0
        %363 = vmatpush.bf16.msra.mxu0 0
        %364 = vmatpush.bf16.msra.mxu0 0
        %365 = vmatpush.bf16.msra.mxu0 0
        %366 = vmatpush.bf16.msra.mxu0 %v358
        %367 = vmatpush.bf16.msra.mxu0 %v301
        %368 = vmatmul.bf16.gmra.mxu0 %v306
        %v369 = vpop.f32.mrf.mxu0
        %v370 = vadd.f32 %v211, %v369
        %v371 = vpop.f32.mrf.mxu0
        %v372 = vadd.f32 %v211, %v371
        %373 = vmatmul.bf16.gmra.mxu0 %v309
        %v374 = vpop.f32.mrf.mxu0
        %v375 = vadd.f32 %v211, %v374
        %v376 = vpop.f32.mrf.mxu0
        %v377 = vadd.f32 %v211, %v376
        %378 = vmatmul.bf16.gmra.mxu0 %v312
        %v379 = vpop.f32.mrf.mxu0
        %v380 = vadd.f32 %v211, %v379
        %v381 = vpop.f32.mrf.mxu0
        %v382 = vadd.f32 %v211, %v381
        %383 = vmatmul.bf16.gmra.mxu0 %v315
        %v384 = vpop.f32.mrf.mxu0
        %v385 = vadd.f32 %v211, %v384
        %v386 = vpop.f32.mrf.mxu0
        %v387 = vadd.f32 %v211, %v386
        %388 = vmatmul.bf16.gmra.mxu0 %v318
        %v389 = vpop.f32.mrf.mxu0
        %v390 = vadd.f32 %v211, %v389
        %v391 = vpop.f32.mrf.mxu0
        %v392 = vadd.f32 %v211, %v391
        %393 = vmatmul.bf16.gmra.mxu0 %v321
        %v394 = vpop.f32.mrf.mxu0
        %v395 = vadd.f32 %v211, %v394
        %v396 = vpop.f32.mrf.mxu0
        %v397 = vadd.f32 %v211, %v396
        %398 = vmatmul.bf16.gmra.mxu0 %v324
        %v399 = vpop.f32.mrf.mxu0
        %v400 = vadd.f32 %v211, %v399
        %v401 = vpop.f32.mrf.mxu0
        %v402 = vadd.f32 %v211, %v401
        %403 = vmatmul.bf16.gmra.mxu0 %v327
        %v404 = vpop.f32.mrf.mxu0
        %v405 = vadd.f32 %v211, %v404
        %v406 = vpop.f32.mrf.mxu0
        %v407 = vadd.f32 %v211, %v406
        %408 = vmatmul.bf16.gmra.mxu0 %v330
        %v409 = vpop.f32.mrf.mxu0
        %v410 = vadd.f32 %v211, %v409
        %v411 = vpop.f32.mrf.mxu0
        %v412 = vadd.f32 %v211, %v411
        %413 = vmatmul.bf16.gmra.mxu0 %v333
        %v414 = vpop.f32.mrf.mxu0
        %v415 = vadd.f32 %v211, %v414
        %v416 = vpop.f32.mrf.mxu0
        %v417 = vadd.f32 %v211, %v416
        %418 = vmatmul.bf16.gmra.mxu0 %v336
        %v419 = vpop.f32.mrf.mxu0
        %v420 = vadd.f32 %v211, %v419
        %v421 = vpop.f32.mrf.mxu0
        %v422 = vadd.f32 %v211, %v421
        %423 = vmatmul.bf16.gmra.mxu0 %v339
        %v424 = vpop.f32.mrf.mxu0
        %v425 = vadd.f32 %v211, %v424
        %v426 = vpop.f32.mrf.mxu0
        %v427 = vadd.f32 %v211, %v426
        %428 = vmatmul.bf16.gmra.mxu0 %v342
        %v429 = vpop.f32.mrf.mxu0
        %v430 = vadd.f32 %v211, %v429
        %v431 = vpop.f32.mrf.mxu0
        %v432 = vadd.f32 %v211, %v431
        %433 = vmatmul.bf16.gmra.mxu0 %v345
        %v434 = vpop.f32.mrf.mxu0
        %v435 = vadd.f32 %v211, %v434
        %v436 = vpop.f32.mrf.mxu0
        %v437 = vadd.f32 %v211, %v436
        %438 = vmatmul.bf16.gmra.mxu0 %v348
        %v439 = vpop.f32.mrf.mxu0
        %v440 = vadd.f32 %v211, %v439
        %v441 = vpop.f32.mrf.mxu0
        %v442 = vadd.f32 %v211, %v441
        %443 = vmatmul.bf16.gmra.mxu0 %v351
        %v444 = vpop.f32.mrf.mxu0
        %v445 = vadd.f32 %v211, %v444
        %v446 = vpop.f32.mrf.mxu0
        %v447 = vadd.f32 %v211, %v446
        %448 = vdwg.mxu0
        %v449 = vmax.f32 %v370, 0.0
        %v450 = vmax.f32 %v372, 0.0
        %v451 = vmax.f32 %v375, 0.0
        %v452 = vmax.f32 %v377, 0.0
        %v453 = vmax.f32 %v380, 0.0
        %v454 = vmax.f32 %v382, 0.0
        %v455 = vmax.f32 %v385, 0.0
        %v456 = vmax.f32 %v387, 0.0
        %v457 = vmax.f32 %v390, 0.0
        %v458 = vmax.f32 %v392, 0.0
        %v459 = vmax.f32 %v395, 0.0
        %v460 = vmax.f32 %v397, 0.0
        %v461 = vmax.f32 %v400, 0.0
        %v462 = vmax.f32 %v402, 0.0
        %v463 = vmax.f32 %v405, 0.0
        %v464 = vmax.f32 %v407, 0.0
        %v465 = vmax.f32 %v410, 0.0
        %v466 = vmax.f32 %v412, 0.0
        %v467 = vmax.f32 %v415, 0.0
        %v468 = vmax.f32 %v417, 0.0
        %v469 = vmax.f32 %v420, 0.0
        %v470 = vmax.f32 %v422, 0.0
        %v471 = vmax.f32 %v425, 0.0
        %v472 = vmax.f32 %v427, 0.0
        %v473 = vmax.f32 %v430, 0.0
        %v474 = vmax.f32 %v432, 0.0
        %v475 = vmax.f32 %v435, 0.0
        %v476 = vmax.f32 %v437, 0.0
        %v477 = vmax.f32 %v440, 0.0
        %v478 = vmax.f32 %v442, 0.0
        %v479 = vmax.f32 %v445, 0.0
        %v480 = vmax.f32 %v447, 0.0
        %481 = vst [vmem:[%s164] sm:$0xff] %v449
        %482 = vst [vmem:[%s164 + $0x8] sm:$0xff] %v450
        %483 = vst [vmem:[%s164 + $0x10] sm:$0xff] %v451
        %484 = vst [vmem:[%s164 + $0x18] sm:$0xff] %v452
        %485 = vst [vmem:[%s164 + $0x20] sm:$0xff] %v453
        %486 = vst [vmem:[%s164 + $0x28] sm:$0xff] %v454
        %487 = vst [vmem:[%s164 + $0x30] sm:$0xff] %v455
        %488 = vst [vmem:[%s164 + $0x38] sm:$0xff] %v456
        %489 = vst [vmem:[%s164 + $0x40] sm:$0xff] %v457
        %490 = vst [vmem:[%s164 + $0x48] sm:$0xff] %v458
        %491 = vst [vmem:[%s164 + $0x50] sm:$0xff] %v459
        %492 = vst [vmem:[%s164 + $0x58] sm:$0xff] %v460
        %493 = vst [vmem:[%s164 + $0x60] sm:$0xff] %v461
        %494 = vst [vmem:[%s164 + $0x68] sm:$0xff] %v462
        %495 = vst [vmem:[%s164 + $0x70] sm:$0xff] %v463
        %496 = vst [vmem:[%s164 + $0x78] sm:$0xff] %v464
        %497 = vst [vmem:[%s164 + $0x80] sm:$0xff] %v465
        %498 = vst [vmem:[%s164 + $0x88] sm:$0xff] %v466
        %499 = vst [vmem:[%s164 + $0x90] sm:$0xff] %v467
        %500 = vst [vmem:[%s164 + $0x98] sm:$0xff] %v468
        %501 = vst [vmem:[%s164 + $0xa0] sm:$0xff] %v469
        %502 = vst [vmem:[%s164 + $0xa8] sm:$0xff] %v470
        %503 = vst [vmem:[%s164 + $0xb0] sm:$0xff] %v471
        %504 = vst [vmem:[%s164 + $0xb8] sm:$0xff] %v472
        %505 = vst [vmem:[%s164 + $0xc0] sm:$0xff] %v473
        %506 = vst [vmem:[%s164 + $0xc8] sm:$0xff] %v474
        %507 = vst [vmem:[%s164 + $0xd0] sm:$0xff] %v475
        %508 = vst [vmem:[%s164 + $0xd8] sm:$0xff] %v476
        %509 = vst [vmem:[%s164 + $0xe0] sm:$0xff] %v477
        %510 = vst [vmem:[%s164 + $0xe8] sm:$0xff] %v478
        %511 = vst [vmem:[%s164 + $0xf0] sm:$0xff] %v479
        %512 = vst [vmem:[%s164 + $0xf8] sm:$0xff] %v480
        %s513 = sand.u32 %s93, 1
        %s514 = scalar_lea.sflag [#allocation3], %s513
        %s515 = sand.u32 %s93, 1
        %s516 = smul.addr %s515, 256
        %s517 = scalar_lea.vmem [#allocation2], %s516
        // Predicated region
        $region33: #{tpu_custom_call.1} parent=31 // pred_check
          %p518 = pneg %p103
        $region34: #{tpu_custom_call.1} parent=31 // pred_check_branch
          %520 = sbr.rel (%p518) target = $region36
        $region35: #{tpu_custom_call.1} parent=31 // pred_region
          %s521 = smul.u32 32, %s17
          %523 = vsyncadd %s514, 0
          %s524 = smul.addr %s521, 8
          %s525 = scalar_lea.hbm %s3, %s524
          %s526 = sshll.u32 %s517, 4
          %s527 = int_to_ptr.vmem [resolvable:$true] %s526
          %s528 = sshll.u32 %s525, 4
          %s529 = int_to_ptr.hbm [resolvable:$true] %s528
          %534 = dma.vmem_to_hbm [thread:$0]  %s527, 4096, %s529, %s514, 128, 128, 8
        $region36: #{tpu_custom_call.1} parent=31 // pred_fallthru
          _
      $region32: #{tpu_custom_call.1} parent=5 // pred_fallthru
        _
      %p535 = scmp.le.s32.totalorder 2, %s12
      // Predicated region
      $region37: #{tpu_custom_call.1} parent=5 // pred_check
        %p536 = pneg %p535
      $region38: #{tpu_custom_call.1} parent=5 // pred_check_branch
        %538 = sbr.rel (%p536) target = $region40
      $region39: #{tpu_custom_call.1} parent=5 // pred_region
        %s539 = ssub.s32 %s12, 2
        // Predicated region
        $region41: #{tpu_custom_call.1} parent=39 // pred_check
          %p540 = pneg %p109
        $region42: #{tpu_custom_call.1} parent=39 // pred_check_branch
          %542 = sbr.rel (%p540) target = $region44
        $region43: #{tpu_custom_call.1} parent=39 // pred_region
          %s543 = sand.u32 %s94, 1
          %s544 = scalar_lea.sflag [#allocation3], %s543
          %s545 = sand.u32 %s94, 1
          %s546 = smul.addr %s545, 256
          %s547 = scalar_lea.vmem [#allocation2], %s546
          %549 = dma.done %s544, 4096
        $region44: #{tpu_custom_call.1} parent=39 // pred_fallthru
          _
      $region40: #{tpu_custom_call.1} parent=5 // pred_fallthru
        _
    $region6: #{tpu_custom_call.1} parent=1 // loop_footer
      %s16 = sadd.s32 1, %s12
    $region7: #{tpu_custom_call.1} parent=1 // loop_footer_branch
      %11 = sbr.rel target = $region3
    $region8: #{tpu_custom_call.1} parent=1 // loop_exit
      _
    %550 = vsyncpa [#allocation3], 1
    %s551 = scalar_lea.sflag [#allocation3], 1
    %552 = vsyncpa %s551, 1

</llo_original>
